<compile_context>
chip_gen: v7x
topology: tpu7x:2x2x1
jax: 0.10.0
libtpu: 0.0.40
codegen_flags: <defaults>
</compile_context>

<pallas_src>
import functools

import jax
import jax.numpy as jnp
from jax.experimental import pallas as pl
from jax.experimental.pallas import tpu as pltpu

EPS = 1e-5  # nn.LayerNorm default


def _round_up(x, m):
    return (x + m - 1) // m * m


def _ffn_residual_ln_kernel(x_ref, w1_ref, b1_ref, w2_ref, b2_ref,
                            gamma_ref, beta_ref, o_ref, *, inv_d):
    # x_ref:     (TM, Dp) f32   residual-input row tile of the flattened (B*S, D)
    # w1_ref:    (Dp, Fp) bf16  first linear weight, input-major: h1 = x @ w1 + b1
    # b1_ref:    (1, Fp)  f32   first linear bias    (zero in pad columns)
    # w2_ref:    (Fp, Dp) bf16  second linear weight: y = relu(h1) @ w2 + b2
    # b2_ref:    (1, Dp)  f32   second linear bias   (zero in pad columns)
    # gamma_ref: (1, Dp)  f32   LayerNorm scale      (zero in pad columns)
    # beta_ref:  (1, Dp)  f32   LayerNorm shift      (zero in pad columns)
    x = x_ref[...]

    # --- sublayer: Linear(D, F) -> ReLU -> Linear(F, D) on the MXU ---
    h1 = jnp.dot(x.astype(jnp.bfloat16), w1_ref[...],
                 preferred_element_type=jnp.float32) + b1_ref[...]
    h1 = jnp.maximum(h1, 0.0)
    y = jnp.dot(h1.astype(jnp.bfloat16), w2_ref[...],
                preferred_element_type=jnp.float32) + b2_ref[...]

    # --- dropout ---
    # TODO(synk): training-mode dropout (pltpu.prng_seed + prng_random_bits mask
    # and 1/(1-p) scaling) not implemented; eval-mode dropout is the identity.

    # --- residual add (f32 VPU) ---
    h = x + y

    # --- LayerNorm over the true feature width D (pad columns of h are 0) ---
    mean = jnp.sum(h, axis=-1, keepdims=True) * inv_d
    var = jnp.sum(h * h, axis=-1, keepdims=True) * inv_d - mean * mean
    normed = (h - mean) * jax.lax.rsqrt(var + EPS)
    o_ref[...] = normed * gamma_ref[...] + beta_ref[...]


def _working_set_bytes(tm, d_pad, f_pad):
    return (2 * 2 * tm * d_pad * 4          # x + out tiles, double-buffered, f32
            + 2 * 2 * d_pad * f_pad * 2     # W1 + W2 bf16, 2 buffers each
            + 2 * (f_pad + 3 * d_pad) * 4   # b1 / b2 / gamma / beta
            + 2 * tm * f_pad * 4)           # (TM, Fp) hidden activation headroom


def _choose_tm(m_rows, d_pad, f_pad, vmem_budget=40 * 1024 * 1024):
    """Largest row tile whose double-buffered working set fits the VMEM budget."""
    tm = 128
    for cand in (512, 256, 128):
        if _working_set_bytes(cand, d_pad, f_pad) <= vmem_budget:
            tm = cand
            break
    # TODO(synk): for very large D * dim_feedforward (e.g. 2048 x 8192) even
    # TM=128 may not fit on v7x (64 MiB VMEM); that regime needs a hidden-dim
    # (F) grid axis with an f32 accumulator scratch.
    return min(tm, _round_up(m_rows, 8))


def residual2_ffn(x, w1, b1, w2, b2, gamma, beta):
    """Fused LayerNorm(x + (relu(x @ w1 + b1) @ w2 + b2)).

    x: (B, S, D) f32.
    w1: (D, F), w2: (F, D), both *input-major* (transpose of nn.Linear .weight).
    b1: (F,), b2/gamma/beta: (D,), all f32.
    Returns (B, S, D) f32.
    """
    B, S, D = x.shape
    Din, F = w1.shape
    assert Din == D and w2.shape == (F, D), "w1 must be (D, F), w2 must be (F, D)"
    M = B * S

    # Lane-dense feature dims: pad D and F up to multiples of 128.
    Dp = _round_up(D, 128)
    Fp = _round_up(F, 128)
    tm = _choose_tm(M, Dp, Fp)
    Mp = _round_up(M, tm)

    x2 = x.reshape(M, D)
    if (Mp, Dp) != (M, D):
        x2 = jnp.pad(x2, ((0, Mp - M), (0, Dp - D)))
    w1_p = jnp.pad(w1, ((0, Dp - D), (0, Fp - F))).astype(jnp.bfloat16)  # cast once
    w2_p = jnp.pad(w2, ((0, Fp - F), (0, Dp - D))).astype(jnp.bfloat16)
    b1_p = jnp.pad(b1, (0, Fp - F)).reshape(1, Fp).astype(jnp.float32)
    b2_p = jnp.pad(b2, (0, Dp - D)).reshape(1, Dp).astype(jnp.float32)
    g_p = jnp.pad(gamma, (0, Dp - D)).reshape(1, Dp).astype(jnp.float32)
    be_p = jnp.pad(beta, (0, Dp - D)).reshape(1, Dp).astype(jnp.float32)

    kernel = functools.partial(_ffn_residual_ln_kernel, inv_d=1.0 / D)

    vmem_need = _working_set_bytes(tm, Dp, Fp)
    vmem_limit = int(min(max(vmem_need + (4 << 20), 16 << 20), 64 << 20))

    cost = pl.CostEstimate(
        flops=4 * Mp * Dp * Fp + 8 * Mp * Dp + Mp * Fp,
        transcendentals=Mp,  # one rsqrt per row
        bytes_accessed=(2 * Mp * Dp * 4            # x in, out
                        + 2 * Dp * Fp * 2          # W1 + W2 bf16
                        + (Fp + 3 * Dp) * 4),      # biases / gamma / beta
    )

    out = pl.pallas_call(
        kernel,
        out_shape=jax.ShapeDtypeStruct((Mp, Dp), jnp.float32),
        grid=(Mp // tm,),
        in_specs=[
            pl.BlockSpec((tm, Dp), lambda i: (i, 0)),   # x tile (pipelined)
            pl.BlockSpec((Dp, Fp), lambda i: (0, 0)),   # W1 (resident)
            pl.BlockSpec((1, Fp), lambda i: (0, 0)),    # b1
            pl.BlockSpec((Fp, Dp), lambda i: (0, 0)),   # W2 (resident)
            pl.BlockSpec((1, Dp), lambda i: (0, 0)),    # b2
            pl.BlockSpec((1, Dp), lambda i: (0, 0)),    # gamma
            pl.BlockSpec((1, Dp), lambda i: (0, 0)),    # beta
        ],
        out_specs=pl.BlockSpec((tm, Dp), lambda i: (i, 0)),
        compiler_params=pltpu.CompilerParams(
            dimension_semantics=("parallel",),
            vmem_limit_bytes=vmem_limit,
        ),
        cost_estimate=cost,
    )(x2, w1_p, b1_p, w2_p, b2_p, g_p, be_p)

    return out[:M, :D].reshape(B, S, D)


def _layernorm(h, gamma, beta):
    mean = jnp.mean(h, axis=-1, keepdims=True)
    var = jnp.mean((h - mean) ** 2, axis=-1, keepdims=True)
    return (h - mean) / jnp.sqrt(var + EPS) * gamma + beta


def _reference_f32(x, w1, b1, w2, b2, gamma, beta):
    h1 = jnp.maximum(jnp.einsum("bsd,df->bsf", x, w1) + b1, 0.0)
    y = jnp.einsum("bsf,fd->bsd", h1, w2) + b2
    return _layernorm(x + y, gamma, beta)  # dropout is identity in eval mode


def _reference_bf16_matmul(x, w1, b1, w2, b2, gamma, beta):
    h1 = jnp.einsum("bsd,df->bsf", x.astype(jnp.bfloat16), w1.astype(jnp.bfloat16),
                    preferred_element_type=jnp.float32) + b1
    h1 = jnp.maximum(h1, 0.0)
    y = jnp.einsum("bsf,fd->bsd", h1.astype(jnp.bfloat16), w2.astype(jnp.bfloat16),
                   preferred_element_type=jnp.float32) + b2
    return _layernorm(x + y, gamma, beta)


if __name__ == "__main__":
    key = jax.random.PRNGKey(0)

    def make_inputs(k, B, S, D, F):
        kx, k1, k2, kb1, kb2 = jax.random.split(k, 5)
        x = jax.random.normal(kx, (B, S, D), dtype=jnp.float32)
        # nn.Linear-like scale, stored input-major (D_in, D_out).
        w1 = jax.random.normal(k1, (D, F), dtype=jnp.float32) * (1.0 / jnp.sqrt(D))
        w2 = jax.random.normal(k2, (F, D), dtype=jnp.float32) * (1.0 / jnp.sqrt(F))
        b1 = jax.random.normal(kb1, (F,), dtype=jnp.float32) * 0.01
        b2 = jax.random.normal(kb2, (D,), dtype=jnp.float32) * 0.01
        gamma = jnp.ones((D,), dtype=jnp.float32)   # nn.LayerNorm default weight
        beta = jnp.zeros((D,), dtype=jnp.float32)   # nn.LayerNorm default bias
        return x, w1, b1, w2, b2, gamma, beta

    k1, k2 = jax.random.split(key)

    # Case 1: small module-like shapes; D=32, F=64 exercise the lane-padding path.
    args = make_inputs(k1, 2, 8, 32, 64)
    out = residual2_ffn(*args)
    jax.block_until_ready(out)
    assert out.shape == (2, 8, 32)
    assert jnp.allclose(out, _reference_bf16_matmul(*args),
                        atol=1e-2, rtol=1e-2), "case 1: mismatch vs bf16-matmul ref"
    assert jnp.allclose(out, _reference_f32(*args),
                        atol=5e-2, rtol=5e-2), "case 1: mismatch vs f32 ref"

    # Case 2: lane-dense D/F, multiple grid steps (resident weights, pipelined rows).
    args = make_inputs(k2, 4, 256, 256, 512)
    out = residual2_ffn(*args)
    jax.block_until_ready(out)
    assert out.shape == (4, 256, 256)
    assert jnp.allclose(out, _reference_bf16_matmul(*args),
                        atol=1e-2, rtol=1e-2), "case 2: mismatch vs bf16-matmul ref"
    assert jnp.allclose(out, _reference_f32(*args),
                        atol=5e-2, rtol=5e-2), "case 2: mismatch vs f32 ref"

    print("KERNEL_OK")
</pallas_src>

<mosaic_0001>
module attributes {stable_mosaic.version = 11 : i64} {
  func.func @_ffn_residual_ln_kernel(%arg0: i32, %arg1: memref<16x128xf32, #tpu.memory_space<vmem>>, %arg2: memref<128x128xbf16, #tpu.memory_space<vmem>>, %arg3: memref<1x128xf32, #tpu.memory_space<vmem>>, %arg4: memref<128x128xbf16, #tpu.memory_space<vmem>>, %arg5: memref<1x128xf32, #tpu.memory_space<vmem>>, %arg6: memref<1x128xf32, #tpu.memory_space<vmem>>, %arg7: memref<1x128xf32, #tpu.memory_space<vmem>>, %arg8: memref<16x128xf32, #tpu.memory_space<vmem>>) attributes {dimension_semantics = [#tpu.dimension_semantics<parallel>], iteration_bounds = array<i64: 1>, scalar_prefetch = 0 : i64, scratch_operands = 0 : i64, tpu.core_type = #tpu.core_type<tc>, window_params = [{transform_indices = @transform_0, window_bounds = array<i64: 16, 128>}, {pipeline_mode = #tpu.pipeline_mode<synchronous>, transform_indices = @transform_1, window_bounds = array<i64: 128, 128>}, {pipeline_mode = #tpu.pipeline_mode<synchronous>, transform_indices = @transform_2, window_bounds = array<i64: 1, 128>}, {pipeline_mode = #tpu.pipeline_mode<synchronous>, transform_indices = @transform_3, window_bounds = array<i64: 128, 128>}, {pipeline_mode = #tpu.pipeline_mode<synchronous>, transform_indices = @transform_4, window_bounds = array<i64: 1, 128>}, {pipeline_mode = #tpu.pipeline_mode<synchronous>, transform_indices = @transform_5, window_bounds = array<i64: 1, 128>}, {pipeline_mode = #tpu.pipeline_mode<synchronous>, transform_indices = @transform_6, window_bounds = array<i64: 1, 128>}, {transform_indices = @transform_7, window_bounds = array<i64: 16, 128>}]} {
    %c0 = arith.constant 0 : index
    %c0_0 = arith.constant 0 : index
    %0 = vector.load %arg1[%c0, %c0_0] : memref<16x128xf32, #tpu.memory_space<vmem>>, vector<16x128xf32>
    %1 = arith.truncf %0 : vector<16x128xf32> to vector<16x128xbf16>
    %c0_1 = arith.constant 0 : index
    %c0_2 = arith.constant 0 : index
    %2 = vector.load %arg2[%c0_1, %c0_2] : memref<128x128xbf16, #tpu.memory_space<vmem>>, vector<128x128xbf16>
    %cst = arith.constant dense<0.000000e+00> : vector<16x128xf32>
    %3 = tpu.matmul %1, %2, %cst {dimension_numbers = #tpu.dot_dimension_numbers<[1], [0], [0], [1], [0, 0, 1, 1], [], []>} : vector<16x128xbf16>, vector<128x128xbf16>, vector<16x128xf32> -> vector<16x128xf32>
    %c0_3 = arith.constant 0 : index
    %c0_4 = arith.constant 0 : index
    %4 = vector.load %arg3[%c0_3, %c0_4] : memref<1x128xf32, #tpu.memory_space<vmem>>, vector<1x128xf32>
    %5 = vector.broadcast %4 : vector<1x128xf32> to vector<16x128xf32>
    %6 = arith.addf %3, %5 : vector<16x128xf32>
    %cst_5 = arith.constant 0.000000e+00 : f32
    %7 = vector.broadcast %cst_5 : f32 to vector<16x128xf32>
    %8 = arith.maximumf %6, %7 : vector<16x128xf32>
    %9 = arith.truncf %8 : vector<16x128xf32> to vector<16x128xbf16>
    %c0_6 = arith.constant 0 : index
    %c0_7 = arith.constant 0 : index
    %10 = vector.load %arg4[%c0_6, %c0_7] : memref<128x128xbf16, #tpu.memory_space<vmem>>, vector<128x128xbf16>
    %cst_8 = arith.constant dense<0.000000e+00> : vector<16x128xf32>
    %11 = tpu.matmul %9, %10, %cst_8 {dimension_numbers = #tpu.dot_dimension_numbers<[1], [0], [0], [1], [0, 0, 1, 1], [], []>} : vector<16x128xbf16>, vector<128x128xbf16>, vector<16x128xf32> -> vector<16x128xf32>
    %c0_9 = arith.constant 0 : index
    %c0_10 = arith.constant 0 : index
    %12 = vector.load %arg5[%c0_9, %c0_10] : memref<1x128xf32, #tpu.memory_space<vmem>>, vector<1x128xf32>
    %13 = vector.broadcast %12 : vector<1x128xf32> to vector<16x128xf32>
    %14 = arith.addf %11, %13 : vector<16x128xf32>
    %15 = arith.addf %0, %14 : vector<16x128xf32>
    %cst_11 = arith.constant dense<0.000000e+00> : vector<16xf32>
    %16 = vector.multi_reduction <add>, %15, %cst_11 [1] : vector<16x128xf32> to vector<16xf32>
    %17 = vector.shape_cast %16 : vector<16xf32> to vector<16x1xf32>
    %cst_12 = arith.constant 3.125000e-02 : f32
    %18 = vector.broadcast %cst_12 : f32 to vector<16x1xf32>
    %19 = arith.mulf %17, %18 : vector<16x1xf32>
    %20 = arith.mulf %15, %15 : vector<16x128xf32>
    %cst_13 = arith.constant dense<0.000000e+00> : vector<16xf32>
    %21 = vector.multi_reduction <add>, %20, %cst_13 [1] : vector<16x128xf32> to vector<16xf32>
    %22 = vector.shape_cast %21 : vector<16xf32> to vector<16x1xf32>
    %cst_14 = arith.constant 3.125000e-02 : f32
    %23 = vector.broadcast %cst_14 : f32 to vector<16x1xf32>
    %24 = arith.mulf %22, %23 : vector<16x1xf32>
    %25 = arith.mulf %19, %19 : vector<16x1xf32>
    %26 = arith.subf %24, %25 : vector<16x1xf32>
    %27 = vector.broadcast %19 : vector<16x1xf32> to vector<16x128xf32>
    %28 = arith.subf %15, %27 : vector<16x128xf32>
    %cst_15 = arith.constant 9.99999974E-6 : f32
    %29 = vector.broadcast %cst_15 : f32 to vector<16x1xf32>
    %30 = arith.addf %26, %29 : vector<16x1xf32>
    %31 = math.rsqrt %30 : vector<16x1xf32>
    %32 = vector.broadcast %31 : vector<16x1xf32> to vector<16x128xf32>
    %33 = arith.mulf %28, %32 : vector<16x128xf32>
    %c0_16 = arith.constant 0 : index
    %c0_17 = arith.constant 0 : index
    %34 = vector.load %arg6[%c0_16, %c0_17] : memref<1x128xf32, #tpu.memory_space<vmem>>, vector<1x128xf32>
    %35 = vector.broadcast %34 : vector<1x128xf32> to vector<16x128xf32>
    %36 = arith.mulf %33, %35 : vector<16x128xf32>
    %c0_18 = arith.constant 0 : index
    %c0_19 = arith.constant 0 : index
    %37 = vector.load %arg7[%c0_18, %c0_19] : memref<1x128xf32, #tpu.memory_space<vmem>>, vector<1x128xf32>
    %38 = vector.broadcast %37 : vector<1x128xf32> to vector<16x128xf32>
    %39 = arith.addf %36, %38 : vector<16x128xf32>
    %c0_20 = arith.constant 0 : index
    %c0_21 = arith.constant 0 : index
    %40 = vector.load %arg8[%c0_20, %c0_21] : memref<16x128xf32, #tpu.memory_space<vmem>>, vector<16x128xf32>
    tpu.vector_store %arg8[%c0_20, %c0_21], %39 {strides = array<i32>} : memref<16x128xf32, #tpu.memory_space<vmem>>, vector<16x128xf32>,
    return
  }
  func.func @transform_0(%arg0: i32) -> (i32, i32) {
    %c0_i32 = arith.constant 0 : i32
    %c0_i32_0 = arith.constant 0 : i32
    return %arg0, %c0_i32 : i32, i32
  }
  func.func @transform_1(%arg0: i32) -> (i32, i32) {
    %c0_i32 = arith.constant 0 : i32
    %c0_i32_0 = arith.constant 0 : i32
    %c0_i32_1 = arith.constant 0 : i32
    return %c0_i32, %c0_i32_0 : i32, i32
  }
  func.func @transform_2(%arg0: i32) -> (i32, i32) {
    %c0_i32 = arith.constant 0 : i32
    %c0_i32_0 = arith.constant 0 : i32
    %c0_i32_1 = arith.constant 0 : i32
    return %c0_i32, %c0_i32_0 : i32, i32
  }
  func.func @transform_3(%arg0: i32) -> (i32, i32) {
    %c0_i32 = arith.constant 0 : i32
    %c0_i32_0 = arith.constant 0 : i32
    %c0_i32_1 = arith.constant 0 : i32
    return %c0_i32, %c0_i32_0 : i32, i32
  }
  func.func @transform_4(%arg0: i32) -> (i32, i32) {
    %c0_i32 = arith.constant 0 : i32
    %c0_i32_0 = arith.constant 0 : i32
    %c0_i32_1 = arith.constant 0 : i32
    return %c0_i32, %c0_i32_0 : i32, i32
  }
  func.func @transform_5(%arg0: i32) -> (i32, i32) {
    %c0_i32 = arith.constant 0 : i32
    %c0_i32_0 = arith.constant 0 : i32
    %c0_i32_1 = arith.constant 0 : i32
    return %c0_i32, %c0_i32_0 : i32, i32
  }
  func.func @transform_6(%arg0: i32) -> (i32, i32) {
    %c0_i32 = arith.constant 0 : i32
    %c0_i32_0 = arith.constant 0 : i32
    %c0_i32_1 = arith.constant 0 : i32
    return %c0_i32, %c0_i32_0 : i32, i32
  }
  func.func @transform_7(%arg0: i32) -> (i32, i32) {
    %c0_i32 = arith.constant 0 : i32
    %c0_i32_0 = arith.constant 0 : i32
    return %arg0, %c0_i32 : i32, i32
  }
}

</mosaic_0001>

<llo_original>
// kernel: tpu_custom_call.1
$region0: #{tpu_custom_call.1}
  #allocation0 [shape = 'u32[]', space=smem, size = 0x4, offset = 0x4, fixed_abs, tag = 'smem constant byte address 0x4 - core index']
  #allocation1 [shape = 'u32[144,128]{1,0:T(1,128)}', space=vmem, size = 0x12000, scoped, tag = 'internal scratch']
  %s0 = inlined_call_operand.hbm [shape: f32[16,128], index: 0, kind: input, shape index: {}]
  %s1 = inlined_call_operand.hbm [shape: bf16[128,128], index: 1, kind: input, shape index: {}]
  %s2 = inlined_call_operand.vmem [shape: f32[1,128], index: 2, kind: input, shape index: {}]
  %s3 = inlined_call_operand.hbm [shape: bf16[128,128], index: 3, kind: input, shape index: {}]
  %s4 = inlined_call_operand.vmem [shape: f32[1,128], index: 4, kind: input, shape index: {}]
  %s5 = inlined_call_operand.vmem [shape: f32[1,128], index: 5, kind: input, shape index: {}]
  %s6 = inlined_call_operand.vmem [shape: f32[1,128], index: 6, kind: input, shape index: {}]
  %s7 = inlined_call_operand.hbm [shape: f32[16,128], index: 7, kind: output, shape index: {}]
  %s8 = sld [smem:[#allocation0]]
  $region50: #{tpu_custom_call.1} parent=0
    _
  %s10 = ssub.s32 1, %s8
  %s11 = scalar_select 0, %s10, %s8
  $region1: #{tpu_custom_call.1} parent=0
    #allocation2 [shape = 'u8[8192]{0}', space=vmem, size = 0x2000, scoped, tag = 'input window, operand 0, single buffered']
    #allocation3 [shape = 's32[1]{0}', space=sflag, size = 0x4, scoped, tag = 'scoped memory for tpu_custom_call.1']
    #allocation4 [shape = 's32[1]{0}', space=sflag, size = 0x4, scoped, tag = 'scoped memory for tpu_custom_call.1']
    #allocation5 [shape = 'u8[32768]{0}', space=vmem, size = 0x8000, scoped, tag = 'input window, operand 1, single buffered']
    #allocation6 [shape = 's32[1]{0}', space=sflag, size = 0x4, scoped, tag = 'scoped memory for tpu_custom_call.1']
    #allocation7 [shape = 'u8[32768]{0}', space=vmem, size = 0x8000, scoped, tag = 'input window, operand 3, single buffered']
    #allocation8 [shape = 'u8[8192]{0}', space=vmem, size = 0x2000, scoped, tag = 'output window, operand 0, single buffered']
    %12 = vsyncpa [#allocation3], 0
    %13 = vsyncpa [#allocation6], 0
    %14 = vsyncpa [#allocation4], 0
    // Predicated region
    $region2: #{tpu_custom_call.1} parent=1 // pred_check
      _
    $region3: #{tpu_custom_call.1} parent=1 // pred_check_branch
      %16 = sbr.rel (0) target = $region5
    $region4: #{tpu_custom_call.1} parent=1 // pred_region
      %s18 = ssub.s32 256, 256
      %19 = vsyncadd [#allocation3], %s18
      %s20 = sshll.u32 [#allocation2], 4
      %s21 = int_to_ptr.vmem [resolvable:$true] %s20
      %26 = dma.hbm_to_vmem [thread:$0]  %s0, 256, %s21, [#allocation3], 128, 128, 8
    $region5: #{tpu_custom_call.1} parent=1 // pred_fallthru
      _
    // Predicated region
    $region6: #{tpu_custom_call.1} parent=1 // pred_check
      _
    $region7: #{tpu_custom_call.1} parent=1 // pred_check_branch
      %28 = sbr.rel (0) target = $region9
    $region8: #{tpu_custom_call.1} parent=1 // pred_region
      %s30 = ssub.s32 1024, 1024
      %31 = vsyncadd [#allocation6], %s30
      %s32 = sshll.u32 [#allocation5], 4
      %s33 = int_to_ptr.vmem [resolvable:$true] %s32
      %38 = dma.hbm_to_vmem [thread:$0]  %s1, 1024, %s33, [#allocation6], 64, 64, 4
    $region9: #{tpu_custom_call.1} parent=1 // pred_fallthru
      _
    // Predicated region
    $region10: #{tpu_custom_call.1} parent=1 // pred_check
      _
    $region11: #{tpu_custom_call.1} parent=1 // pred_check_branch
      %40 = sbr.rel (0) target = $region13
    $region12: #{tpu_custom_call.1} parent=1 // pred_region
      _
    $region13: #{tpu_custom_call.1} parent=1 // pred_fallthru
      _
    // Predicated region
    $region14: #{tpu_custom_call.1} parent=1 // pred_check
      _
    $region15: #{tpu_custom_call.1} parent=1 // pred_check_branch
      %42 = sbr.rel (0) target = $region17
    $region16: #{tpu_custom_call.1} parent=1 // pred_region
      %s44 = ssub.s32 1024, 1024
      %45 = vsyncadd [#allocation6], %s44
      %s46 = sshll.u32 [#allocation7], 4
      %s47 = int_to_ptr.vmem [resolvable:$true] %s46
      %52 = dma.hbm_to_vmem [thread:$0]  %s3, 1024, %s47, [#allocation6], 64, 64, 4
    $region17: #{tpu_custom_call.1} parent=1 // pred_fallthru
      _
    // Predicated region
    $region18: #{tpu_custom_call.1} parent=1 // pred_check
      _
    $region19: #{tpu_custom_call.1} parent=1 // pred_check_branch
      %54 = sbr.rel (0) target = $region21
    $region20: #{tpu_custom_call.1} parent=1 // pred_region
      _
    $region21: #{tpu_custom_call.1} parent=1 // pred_fallthru
      _
    // Predicated region
    $region22: #{tpu_custom_call.1} parent=1 // pred_check
      _
    $region23: #{tpu_custom_call.1} parent=1 // pred_check_branch
      %56 = sbr.rel (0) target = $region25
    $region24: #{tpu_custom_call.1} parent=1 // pred_region
      _
    $region25: #{tpu_custom_call.1} parent=1 // pred_fallthru
      _
    // Predicated region
    $region26: #{tpu_custom_call.1} parent=1 // pred_check
      _
    $region27: #{tpu_custom_call.1} parent=1 // pred_check_branch
      %58 = sbr.rel (0) target = $region29
    $region28: #{tpu_custom_call.1} parent=1 // pred_region
      _
    $region29: #{tpu_custom_call.1} parent=1 // pred_fallthru
      _
    // Predicated region
    $region30: #{tpu_custom_call.1} parent=1 // pred_check
      _
    $region31: #{tpu_custom_call.1} parent=1 // pred_check_branch
      %60 = sbr.rel (0) target = $region33
    $region32: #{tpu_custom_call.1} parent=1 // pred_region
      %61 = dma.done [#allocation3], 256
    $region33: #{tpu_custom_call.1} parent=1 // pred_fallthru
      _
    // Predicated region
    $region34: #{tpu_custom_call.1} parent=1 // pred_check
      _
    $region35: #{tpu_custom_call.1} parent=1 // pred_check_branch
      %63 = sbr.rel (0) target = $region37
    $region36: #{tpu_custom_call.1} parent=1 // pred_region
      %64 = dma.done [#allocation6], 1024
    $region37: #{tpu_custom_call.1} parent=1 // pred_fallthru
      _
    // Predicated region
    $region38: #{tpu_custom_call.1} parent=1 // pred_check
      _
    $region39: #{tpu_custom_call.1} parent=1 // pred_check_branch
      %66 = sbr.rel (0) target = $region41
    $region40: #{tpu_custom_call.1} parent=1 // pred_region
      %67 = dma.done [#allocation6], 1024
    $region41: #{tpu_custom_call.1} parent=1 // pred_fallthru
      _
    %v69 = vld [vmem:[#allocation2] sm:$0xff]
    %v70 = vld [vmem:[#allocation2 + $0x8] sm:$0xff]
    %v71 = vpack.c.bf16 %v70, %v69
    %v72 = vld [vmem:[#allocation5] sm:$0xf]
    %v73 = vld [vmem:[#allocation5 + $0x4] sm:$0xf]
    %v74 = vld [vmem:[#allocation5 + $0x8] sm:$0xf]
    %v75 = vld [vmem:[#allocation5 + $0xc] sm:$0xf]
    %v76 = vld [vmem:[#allocation5 + $0x10] sm:$0xf]
    %v77 = vld [vmem:[#allocation5 + $0x14] sm:$0xf]
    %v78 = vld [vmem:[#allocation5 + $0x18] sm:$0xf]
    %v79 = vld [vmem:[#allocation5 + $0x1c] sm:$0xf]
    %v80 = vld [vmem:[#allocation5 + $0x20] sm:$0xf]
    %v81 = vld [vmem:[#allocation5 + $0x24] sm:$0xf]
    %v82 = vld [vmem:[#allocation5 + $0x28] sm:$0xf]
    %v83 = vld [vmem:[#allocation5 + $0x2c] sm:$0xf]
    %v84 = vld [vmem:[#allocation5 + $0x30] sm:$0xf]
    %v85 = vld [vmem:[#allocation5 + $0x34] sm:$0xf]
    %v86 = vld [vmem:[#allocation5 + $0x38] sm:$0xf]
    %v87 = vld [vmem:[#allocation5 + $0x3c] sm:$0xf]
    %v88 = vld [vmem:[%s2] sm:$0x1]
    %v90 = vlaneseq
    %v91 = vshrl.u32 %v90, 7
    %v92 = vsub.s32 0, %v91
    %v93 = vrot.slane %v88, %v92
    %v111 = vunpack.c.l.b16 %v72
    %v112 = vunpack.c.l.b16 %v73
    %v113 = vunpack.c.l.b16 %v74
    %v114 = vunpack.c.l.b16 %v75
    %v115 = vunpack.c.l.b16 %v76
    %v116 = vunpack.c.l.b16 %v77
    %v117 = vunpack.c.l.b16 %v78
    %v118 = vunpack.c.l.b16 %v79
    %v119 = vunpack.c.l.b16 %v80
    %v120 = vunpack.c.l.b16 %v81
    %v121 = vunpack.c.l.b16 %v82
    %v122 = vunpack.c.l.b16 %v83
    %v123 = vunpack.c.l.b16 %v84
    %v124 = vunpack.c.l.b16 %v85
    %v125 = vunpack.c.l.b16 %v86
    %v126 = vunpack.c.l.b16 %v87
    %v127 = vpack.c.b16 %v112, %v111
    %v128 = vpack.c.b16 %v114, %v113
    %v129 = vpack.c.b16 %v116, %v115
    %v130 = vpack.c.b16 %v118, %v117
    %v131 = vpack.c.b16 %v120, %v119
    %v132 = vpack.c.b16 %v122, %v121
    %v133 = vpack.c.b16 %v124, %v123
    %v134 = vpack.c.b16 %v126, %v125
    %143 = vmatprep.subr.bf16.mxu0 0
    %144 = vmatpush1.bf16.msra.mxu0 %v127
    %145 = vmatprep.subr.bf16.mxu0 0
    %146 = vmatpush1.bf16.msra.mxu0 %v128
    %147 = vmatprep.subr.bf16.mxu0 0
    %148 = vmatpush1.bf16.msra.mxu0 %v129
    %149 = vmatprep.subr.bf16.mxu0 0
    %150 = vmatpush1.bf16.msra.mxu0 %v130
    %151 = vmatprep.subr.bf16.mxu0 0
    %152 = vmatpush1.bf16.msra.mxu0 %v131
    %153 = vmatprep.subr.bf16.mxu0 0
    %154 = vmatpush1.bf16.msra.mxu0 %v132
    %155 = vmatprep.subr.bf16.mxu0 0
    %156 = vmatpush1.bf16.msra.mxu0 %v133
    %157 = vmatprep.subr.bf16.mxu0 0
    %158 = vmatpush1.bf16.msra.mxu0 %v134
    %159 = vmatprep.subr.bf16.mxu0 0
    %160 = vmatpush1.bf16.msra.mxu0 0
    %161 = vmatprep.subr.bf16.mxu0 0
    %162 = vmatpush1.bf16.msra.mxu0 0
    %163 = vmatprep.subr.bf16.mxu0 0
    %164 = vmatpush1.bf16.msra.mxu0 0
    %165 = vmatprep.subr.bf16.mxu0 0
    %166 = vmatpush1.bf16.msra.mxu0 0
    %167 = vmatprep.subr.bf16.mxu0 0
    %168 = vmatpush1.bf16.msra.mxu0 0
    %169 = vmatprep.subr.bf16.mxu0 0
    %170 = vmatpush1.bf16.msra.mxu0 0
    %171 = vmatprep.subr.bf16.mxu0 0
    %172 = vmatpush1.bf16.msra.mxu0 0
    %173 = vmatprep.subr.bf16.mxu0 0
    %174 = vmatpush1.bf16.msra.mxu0 0
    %175 = vmatprep.mubr.bf16.mxu0 0
    %176 = vmatmul.mubr.bf16.gmra.mrb[0].mxu0 %v71
    %v177 = vpop.f32.mrb[0].mxu0
    %v178 = vadd.f32 %v93, %v177
    %v179 = vpop.f32.mrb[0].mxu0
    %v180 = vpop.f32.mrb[0].mxu0
    %v181 = vadd.f32 %v93, %v180
    %v182 = vpop.f32.mrb[0].mxu0
    %183 = vdwg.mxu0
    %v184 = vmax.f32 %v178, 0.0
    %v185 = vmax.f32 %v181, 0.0
    %v186 = vpack.c.bf16 %v185, %v184
    %v187 = vld [vmem:[#allocation7] sm:$0xf]
    %v188 = vld [vmem:[#allocation7 + $0x4] sm:$0xf]
    %v189 = vld [vmem:[#allocation7 + $0x8] sm:$0xf]
    %v190 = vld [vmem:[#allocation7 + $0xc] sm:$0xf]
    %v191 = vld [vmem:[#allocation7 + $0x10] sm:$0xf]
    %v192 = vld [vmem:[#allocation7 + $0x14] sm:$0xf]
    %v193 = vld [vmem:[#allocation7 + $0x18] sm:$0xf]
    %v194 = vld [vmem:[#allocation7 + $0x1c] sm:$0xf]
    %v195 = vld [vmem:[#allocation7 + $0x20] sm:$0xf]
    %v196 = vld [vmem:[#allocation7 + $0x24] sm:$0xf]
    %v197 = vld [vmem:[#allocation7 + $0x28] sm:$0xf]
    %v198 = vld [vmem:[#allocation7 + $0x2c] sm:$0xf]
    %v199 = vld [vmem:[#allocation7 + $0x30] sm:$0xf]
    %v200 = vld [vmem:[#allocation7 + $0x34] sm:$0xf]
    %v201 = vld [vmem:[#allocation7 + $0x38] sm:$0xf]
    %v202 = vld [vmem:[#allocation7 + $0x3c] sm:$0xf]
    %v203 = vld [vmem:[%s4] sm:$0x1]
    %v205 = vlaneseq
    %v206 = vshrl.u32 %v205, 7
    %v207 = vsub.s32 0, %v206
    %v208 = vrot.slane %v203, %v207
    %v226 = vunpack.c.l.b16 %v187
    %v227 = vunpack.c.l.b16 %v188
    %v228 = vunpack.c.l.b16 %v189
    %v229 = vunpack.c.l.b16 %v190
    %v230 = vunpack.c.l.b16 %v191
    %v231 = vunpack.c.l.b16 %v192
    %v232 = vunpack.c.l.b16 %v193
    %v233 = vunpack.c.l.b16 %v194
    %v234 = vunpack.c.l.b16 %v195
    %v235 = vunpack.c.l.b16 %v196
    %v236 = vunpack.c.l.b16 %v197
    %v237 = vunpack.c.l.b16 %v198
    %v238 = vunpack.c.l.b16 %v199
    %v239 = vunpack.c.l.b16 %v200
    %v240 = vunpack.c.l.b16 %v201
    %v241 = vunpack.c.l.b16 %v202
    %v242 = vpack.c.b16 %v227, %v226
    %v243 = vpack.c.b16 %v229, %v228
    %v244 = vpack.c.b16 %v231, %v230
    %v245 = vpack.c.b16 %v233, %v232
    %v246 = vpack.c.b16 %v235, %v234
    %v247 = vpack.c.b16 %v237, %v236
    %v248 = vpack.c.b16 %v239, %v238
    %v249 = vpack.c.b16 %v241, %v240
    %258 = vmatprep.subr.bf16.mxu0 0
    %259 = vmatpush1.bf16.msra.mxu0 %v242
    %260 = vmatprep.subr.bf16.mxu0 0
    %261 = vmatpush1.bf16.msra.mxu0 %v243
    %262 = vmatprep.subr.bf16.mxu0 0
    %263 = vmatpush1.bf16.msra.mxu0 %v244
    %264 = vmatprep.subr.bf16.mxu0 0
    %265 = vmatpush1.bf16.msra.mxu0 %v245
    %266 = vmatprep.subr.bf16.mxu0 0
    %267 = vmatpush1.bf16.msra.mxu0 %v246
    %268 = vmatprep.subr.bf16.mxu0 0
    %269 = vmatpush1.bf16.msra.mxu0 %v247
    %270 = vmatprep.subr.bf16.mxu0 0
    %271 = vmatpush1.bf16.msra.mxu0 %v248
    %272 = vmatprep.subr.bf16.mxu0 0
    %273 = vmatpush1.bf16.msra.mxu0 %v249
    %274 = vmatprep.subr.bf16.mxu0 0
    %275 = vmatpush1.bf16.msra.mxu0 0
    %276 = vmatprep.subr.bf16.mxu0 0
    %277 = vmatpush1.bf16.msra.mxu0 0
    %278 = vmatprep.subr.bf16.mxu0 0
    %279 = vmatpush1.bf16.msra.mxu0 0
    %280 = vmatprep.subr.bf16.mxu0 0
    %281 = vmatpush1.bf16.msra.mxu0 0
    %282 = vmatprep.subr.bf16.mxu0 0
    %283 = vmatpush1.bf16.msra.mxu0 0
    %284 = vmatprep.subr.bf16.mxu0 0
    %285 = vmatpush1.bf16.msra.mxu0 0
    %286 = vmatprep.subr.bf16.mxu0 0
    %287 = vmatpush1.bf16.msra.mxu0 0
    %288 = vmatprep.subr.bf16.mxu0 0
    %289 = vmatpush1.bf16.msra.mxu0 0
    %290 = vmatprep.mubr.bf16.mxu0 0
    %291 = vmatmul.mubr.bf16.gmra.mrb[0].mxu0 %v186
    %v292 = vpop.f32.mrb[0].mxu0
    %v293 = vadd.f32 %v208, %v292
    %v294 = vpop.f32.mrb[0].mxu0
    %v295 = vpop.f32.mrb[0].mxu0
    %v296 = vadd.f32 %v208, %v295
    %v297 = vpop.f32.mrb[0].mxu0
    %298 = vdwg.mxu0
    %v299 = vadd.f32 %v69, %v293
    %v300 = vadd.f32 %v70, %v296
    %301 = vadd.xlane.f32.xlu0 %v299
    %v302 = vpop.xlane.xlu0 %301
    %303 = vadd.xlane.f32.xlu0 %v300
    %v304 = vpop.xlane.xlu0 %303
    %v305 = vmul.f32 %v302, 0.03125
    %v306 = vmul.f32 %v304, 0.03125
    %v307 = vmul.f32 %v299, %v299
    %v308 = vmul.f32 %v300, %v300
    %309 = vadd.xlane.f32.xlu0 %v307
    %v310 = vpop.xlane.xlu0 %309
    %311 = vadd.xlane.f32.xlu0 %v308
    %v312 = vpop.xlane.xlu0 %311
    %v313 = vmul.f32 %v310, 0.03125
    %v314 = vmul.f32 %v312, 0.03125
    %v315 = vmul.f32 %v305, %v305
    %v316 = vmul.f32 %v306, %v306
    %v317 = vsub.f32 %v313, %v315
    %v318 = vsub.f32 %v314, %v316
    %v319 = vsub.f32 %v299, %v305
    %v320 = vsub.f32 %v300, %v306
    %v321 = vadd.f32 %v317, 1e-05
    %v322 = vadd.f32 %v318, 1e-05
    %v323 = vrsqrt.pop %v321
    %v324 = vrsqrt.pop %v322
    %v325 = vmul.f32 %v319, %v323
    %v326 = vmul.f32 %v320, %v324
    %v327 = vld [vmem:[%s5] sm:$0x1]
    %v329 = vlaneseq
    %v330 = vshrl.u32 %v329, 7
    %v331 = vsub.s32 0, %v330
    %v332 = vrot.slane %v327, %v331
    %v334 = vmul.f32 %v325, %v332
    %v335 = vmul.f32 %v326, %v332
    %v336 = vld [vmem:[%s6] sm:$0x1]
    %v338 = vlaneseq
    %v339 = vshrl.u32 %v338, 7
    %v340 = vsub.s32 0, %v339
    %v341 = vrot.slane %v336, %v340
    %v343 = vadd.f32 %v334, %v341
    %v344 = vadd.f32 %v335, %v341
    %345 = vst [vmem:[#allocation8] sm:$0xff] %v343
    %346 = vst [vmem:[#allocation8 + $0x8] sm:$0xff] %v344
    // Predicated region
    $region42: #{tpu_custom_call.1} parent=1 // pred_check
      _
    $region43: #{tpu_custom_call.1} parent=1 // pred_check_branch
      %348 = sbr.rel (0) target = $region45
    $region44: #{tpu_custom_call.1} parent=1 // pred_region
      %s350 = ssub.s32 256, 256
      %351 = vsyncadd [#allocation4], %s350
      %s352 = sshll.u32 [#allocation8], 4
      %s353 = int_to_ptr.vmem [resolvable:$true] %s352
      %358 = dma.vmem_to_hbm [thread:$0]  %s353, 256, %s7, [#allocation4], 128, 128, 8
    $region45: #{tpu_custom_call.1} parent=1 // pred_fallthru
      _
    // Predicated region
    $region46: #{tpu_custom_call.1} parent=1 // pred_check
      _
    $region47: #{tpu_custom_call.1} parent=1 // pred_check_branch
      %360 = sbr.rel (0) target = $region49
    $region48: #{tpu_custom_call.1} parent=1 // pred_region
      %361 = dma.done [#allocation4], 256
    $region49: #{tpu_custom_call.1} parent=1 // pred_fallthru
      _
    %362 = vsyncpa [#allocation3], 1
    %363 = vsyncpa [#allocation6], 1
    %364 = vsyncpa [#allocation4], 1

</llo_original>
